<compile_context>
chip_gen: v7x
topology: tpu7x:2x2x1
jax: 0.10.0
libtpu: 0.0.40
codegen_flags: <defaults>
</compile_context>

<pallas_src>
import functools
import math

import jax
import jax.numpy as jnp
from jax.experimental import pallas as pl
from jax.experimental.pallas import tpu as pltpu


def _round_up(x, m):
    return (x + m - 1) // m * m


def _mlp_kernel(x_ref,
                w1_ref, b1_ref,
                w2_ref, b2_ref,
                w3_ref, b3_ref,
                w4_ref, b4_ref,
                o_ref,
                xk_ref):
    """Fused 4-layer MLP forward for one batch tile (all weights resident in VMEM).

    Matmul inputs are in the param dtype (bf16 by default, native MXU rate);
    accumulation is f32 via preferred_element_type; bias-add is f32; the
    ReLU is applied after the downcast (bit-identical, cheaper on v6e/v7x).
    """
    s = x_ref.shape[1]          # real state_size (e.g. 37)

    # Zero-extend x from s to the 128-lane-padded contraction dim in VMEM.
    # x is stored UN-padded in HBM so the per-step input DMA only moves the
    # real lanes; the zero fill + masked store here are a few vregs of work.
    xk_ref[...] = jnp.zeros_like(xk_ref)
    xk_ref[:, :s] = x_ref[...]

    def layer(h, w_ref, b_ref, relu):
        acc = jnp.dot(h, w_ref[...],
                      preferred_element_type=jnp.float32) + b_ref[...]
        if not relu:
            return acc
        # Downcast-then-ReLU == ReLU-then-downcast; with bf16 params the max()
        # runs at packed bf16 VPU rate and the inter-layer temp is half-size.
        # With f32 params the cast is a no-op (exact PyTorch semantics).
        return jnp.maximum(acc.astype(w_ref.dtype), 0)

    h = layer(xk_ref[...], w1_ref, b1_ref, True)      # fc1 + ReLU
    h = layer(h, w2_ref, b2_ref, True)                # fc2 + ReLU
    h = layer(h, w3_ref, b3_ref, True)                # fc3 + ReLU
    o_ref[...] = layer(h, w4_ref, b4_ref, False).astype(o_ref.dtype)  # fc4


def prepare_params(params, state_size, action_size, param_dtype=jnp.bfloat16):
    """One-time preprocessing (hoisted out of the hot path).

    Transposes PyTorch (out, in) weights to (in, out), zero-pads fc1's K dim
    and fc4's N dim to multiples of 128, casts weights to `param_dtype`
    (bf16 by default; pass jnp.float32 for exact PyTorch-f32 parity), and
    reshapes biases to (1, out) f32 (fc4 bias padded to the padded N).
    """
    k_pad = _round_up(state_size, 128)
    n_pad = _round_up(action_size, 128)

    w1 = jnp.asarray(params["w1"]).T                                  # (state, 512)
    w1 = jnp.pad(w1, ((0, k_pad - state_size), (0, 0))).astype(param_dtype)
    w2 = jnp.asarray(params["w2"]).T.astype(param_dtype)              # (512, 256)
    w3 = jnp.asarray(params["w3"]).T.astype(param_dtype)              # (256, 128)
    w4 = jnp.asarray(params["w4"]).T                                  # (128, action)
    w4 = jnp.pad(w4, ((0, 0), (0, n_pad - action_size))).astype(param_dtype)

    as_row = lambda v: jnp.asarray(v).reshape(1, -1).astype(jnp.float32)
    b1, b2, b3 = as_row(params["b1"]), as_row(params["b2"]), as_row(params["b3"])
    b4 = jnp.pad(as_row(params["b4"]), ((0, 0), (0, n_pad - action_size)))

    return dict(w1=w1, b1=b1, w2=w2, b2=b2, w3=w3, b3=b3, w4=w4, b4=b4)


@functools.partial(jax.jit, static_argnames=("action_size", "batch_tile"))
def state_based_q_network(x, prep, *, action_size, batch_tile=1024):
    """Forward pass equivalent to StateBasedQNetwork.forward.

    x: (B, state_size) float32; prep: output of prepare_params().
    Returns (B, action_size) float32.
    """
    B, S = x.shape
    k_pad = prep["w1"].shape[0]
    n_pad = prep["w4"].shape[1]
    dtype = prep["w1"].dtype

    # Batch tiling: multiples of 16 (bf16 (16,128) sublane tile). Small B runs
    # as a single grid step; for throughput batches (>=256 rows) guarantee
    # >=2 "parallel" grid steps so v7x's two TensorCores both get work.
    b16 = _round_up(B, 16)
    tb = _round_up(min(batch_tile, b16), 16)
    if b16 >= 256 and b16 // tb < 2:
        tb = _round_up(b16 // 2, 16)
    b_pad = _round_up(b16, tb)

    # Only the batch dim is padded; K stays at state_size in HBM (the kernel
    # zero-extends it in VMEM). Casting to the param dtype here (bf16 by
    # default) halves the input DMA bytes and removes the in-kernel cast.
    xp = jnp.pad(x.astype(dtype), ((0, b_pad - B), (0, 0)))

    # Constant index_maps: weights/biases are DMA'd to VMEM once, not per step.
    full = lambda a: pl.BlockSpec(a.shape, lambda i: (0, 0))

    out = pl.pallas_call(
        _mlp_kernel,
        out_shape=jax.ShapeDtypeStruct((b_pad, n_pad), jnp.float32),
        grid_spec=pltpu.PrefetchScalarGridSpec(
            num_scalar_prefetch=0,
            grid=(b_pad // tb,),
            in_specs=[
                pl.BlockSpec((tb, S), lambda i: (i, 0)),          # un-padded x tile
                full(prep["w1"]), full(prep["b1"]),
                full(prep["w2"]), full(prep["b2"]),
                full(prep["w3"]), full(prep["b3"]),
                full(prep["w4"]), full(prep["b4"]),
            ],
            out_specs=pl.BlockSpec((tb, n_pad), lambda i: (i, 0)),  # lane-dense out
            scratch_shapes=[pltpu.VMEM((tb, k_pad), dtype)],        # K-padded x
        ),
        compiler_params=pltpu.CompilerParams(
            dimension_semantics=("parallel",)),
    )(xp, prep["w1"], prep["b1"], prep["w2"], prep["b2"],
      prep["w3"], prep["b3"], prep["w4"], prep["b4"])

    return out[:B, :action_size]


def init_params(key, state_size, action_size):
    """Deterministic init mirroring nn.Linear default: U(-1/sqrt(fan_in), +1/sqrt(fan_in))."""
    dims = [(512, state_size), (256, 512), (128, 256), (action_size, 128)]
    params = {}
    keys = jax.random.split(key, 2 * len(dims))
    for n, (out_f, in_f) in enumerate(dims, start=1):
        bound = 1.0 / math.sqrt(in_f)
        kw, kb = keys[2 * (n - 1)], keys[2 * (n - 1) + 1]
        params[f"w{n}"] = jax.random.uniform(
            kw, (out_f, in_f), jnp.float32, minval=-bound, maxval=bound)
        params[f"b{n}"] = jax.random.uniform(
            kb, (out_f,), jnp.float32, minval=-bound, maxval=bound)
    return params


def _reference_f32(x, params):
    """Pure-f32 reference (exact PyTorch semantics)."""
    h = jnp.maximum(x @ params["w1"].T + params["b1"], 0.0)
    h = jnp.maximum(h @ params["w2"].T + params["b2"], 0.0)
    h = jnp.maximum(h @ params["w3"].T + params["b3"], 0.0)
    return h @ params["w4"].T + params["b4"]


def _reference_mixed(x, params):
    """Mirrors the kernel's numerics: bf16 matmul inputs, f32 accumulation."""
    def lin(h, w, b):
        return jnp.dot(h.astype(jnp.bfloat16), w.T.astype(jnp.bfloat16),
                       preferred_element_type=jnp.float32) + b
    h = jnp.maximum(lin(x, params["w1"], params["b1"]), 0.0)
    h = jnp.maximum(lin(h, params["w2"], params["b2"]), 0.0)
    h = jnp.maximum(lin(h, params["w3"], params["b3"]), 0.0)
    return lin(h, params["w4"], params["b4"])


if __name__ == "__main__":
    state_size = 37   # Banana environment state size
    action_size = 4

    key = jax.random.PRNGKey(0)
    k_params, k_x, k_x2, k_x3 = jax.random.split(key, 4)
    params = init_params(k_params, state_size, action_size)
    prep = prepare_params(params, state_size, action_size)

    # Deployment-sized batch: single grid step.
    x = jax.random.normal(k_x, (8, state_size), jnp.float32)
    out = jax.block_until_ready(state_based_q_network(x, prep, action_size=action_size))
    assert out.shape == (8, action_size)
    # Tight check vs. a reference matching the kernel's mixed precision.
    assert jnp.allclose(out, _reference_mixed(x, params), atol=2e-3, rtol=2e-3), \
        "mismatch vs mixed-precision reference"
    # Loose sanity check vs. the full-f32 PyTorch-semantics reference.
    assert jnp.allclose(out, _reference_f32(x, params), atol=5e-2, rtol=5e-2), \
        "mismatch vs f32 reference"

    # Multi-tile + batch-padding path (grid of 3, 8 padded rows).
    x2 = jax.random.normal(k_x2, (40, state_size), jnp.float32)
    out2 = jax.block_until_ready(
        state_based_q_network(x2, prep, action_size=action_size, batch_tile=16))
    assert out2.shape == (40, action_size)
    assert jnp.allclose(out2, _reference_mixed(x2, params), atol=2e-3, rtol=2e-3), \
        "mismatch vs mixed-precision reference (tiled path)"

    # Throughput path: default tile, split so the parallel grid has >=2 steps
    # (v7x megacore) plus 20 padded rows.
    x3 = jax.random.normal(k_x3, (300, state_size), jnp.float32)
    out3 = jax.block_until_ready(
        state_based_q_network(x3, prep, action_size=action_size))
    assert out3.shape == (300, action_size)
    assert jnp.allclose(out3, _reference_mixed(x3, params), atol=2e-3, rtol=2e-3), \
        "mismatch vs mixed-precision reference (split path)"

    print("KERNEL_OK")
</pallas_src>

<mosaic_0001>
module attributes {stable_mosaic.version = 11 : i64} {
  func.func @_mlp_kernel(%arg0: i32, %arg1: memref<16x37xbf16, #tpu.memory_space<vmem>>, %arg2: memref<128x512xbf16, #tpu.memory_space<vmem>>, %arg3: memref<1x512xf32, #tpu.memory_space<vmem>>, %arg4: memref<512x256xbf16, #tpu.memory_space<vmem>>, %arg5: memref<1x256xf32, #tpu.memory_space<vmem>>, %arg6: memref<256x128xbf16, #tpu.memory_space<vmem>>, %arg7: memref<1x128xf32, #tpu.memory_space<vmem>>, %arg8: memref<128x128xbf16, #tpu.memory_space<vmem>>, %arg9: memref<1x128xf32, #tpu.memory_space<vmem>>, %arg10: memref<16x128xf32, #tpu.memory_space<vmem>>, %arg11: memref<16x128xbf16, #tpu.memory_space<vmem>>) attributes {dimension_semantics = [#tpu.dimension_semantics<parallel>], iteration_bounds = array<i64: 1>, scalar_prefetch = 0 : i64, scratch_operands = 1 : i64, tpu.core_type = #tpu.core_type<tc>, window_params = [{transform_indices = @transform_0, window_bounds = array<i64: 16, 37>}, {pipeline_mode = #tpu.pipeline_mode<synchronous>, transform_indices = @transform_1, window_bounds = array<i64: 128, 512>}, {pipeline_mode = #tpu.pipeline_mode<synchronous>, transform_indices = @transform_2, window_bounds = array<i64: 1, 512>}, {pipeline_mode = #tpu.pipeline_mode<synchronous>, transform_indices = @transform_3, window_bounds = array<i64: 512, 256>}, {pipeline_mode = #tpu.pipeline_mode<synchronous>, transform_indices = @transform_4, window_bounds = array<i64: 1, 256>}, {pipeline_mode = #tpu.pipeline_mode<synchronous>, transform_indices = @transform_5, window_bounds = array<i64: 256, 128>}, {pipeline_mode = #tpu.pipeline_mode<synchronous>, transform_indices = @transform_6, window_bounds = array<i64: 1, 128>}, {pipeline_mode = #tpu.pipeline_mode<synchronous>, transform_indices = @transform_7, window_bounds = array<i64: 128, 128>}, {pipeline_mode = #tpu.pipeline_mode<synchronous>, transform_indices = @transform_8, window_bounds = array<i64: 1, 128>}, {transform_indices = @transform_9, window_bounds = array<i64: 16, 128>}]} {
    %cst = arith.constant 0.000000e+00 : bf16
    %0 = vector.broadcast %cst : bf16 to vector<16x128xbf16>
    %c0 = arith.constant 0 : index
    %c0_0 = arith.constant 0 : index
    %1 = vector.load %arg11[%c0, %c0_0] : memref<16x128xbf16, #tpu.memory_space<vmem>>, vector<16x128xbf16>
    tpu.vector_store %arg11[%c0, %c0_0], %0 {strides = array<i32>} : memref<16x128xbf16, #tpu.memory_space<vmem>>, vector<16x128xbf16>,
    %c0_1 = arith.constant 0 : index
    %c0_2 = arith.constant 0 : index
    %2 = vector.load %arg1[%c0_1, %c0_2] : memref<16x37xbf16, #tpu.memory_space<vmem>>, vector<16x37xbf16>
    %c0_3 = arith.constant 0 : index
    %c0_4 = arith.constant 0 : index
    %3 = vector.load %arg11[%c0_3, %c0_4] : memref<16x128xbf16, #tpu.memory_space<vmem>>, vector<16x37xbf16>
    tpu.vector_store %arg11[%c0_3, %c0_4], %2 {strides = array<i32>} : memref<16x128xbf16, #tpu.memory_space<vmem>>, vector<16x37xbf16>,
    %c0_5 = arith.constant 0 : index
    %c0_6 = arith.constant 0 : index
    %4 = vector.load %arg11[%c0_5, %c0_6] : memref<16x128xbf16, #tpu.memory_space<vmem>>, vector<16x128xbf16>
    %c0_7 = arith.constant 0 : index
    %c0_8 = arith.constant 0 : index
    %5 = vector.load %arg2[%c0_7, %c0_8] : memref<128x512xbf16, #tpu.memory_space<vmem>>, vector<128x512xbf16>
    %cst_9 = arith.constant dense<0.000000e+00> : vector<16x512xf32>
    %6 = tpu.matmul %4, %5, %cst_9 {dimension_numbers = #tpu.dot_dimension_numbers<[1], [0], [0], [1], [0, 0, 1, 1], [], []>} : vector<16x128xbf16>, vector<128x512xbf16>, vector<16x512xf32> -> vector<16x512xf32>
    %c0_10 = arith.constant 0 : index
    %c0_11 = arith.constant 0 : index
    %7 = vector.load %arg3[%c0_10, %c0_11] : memref<1x512xf32, #tpu.memory_space<vmem>>, vector<1x512xf32>
    %8 = vector.broadcast %7 : vector<1x512xf32> to vector<16x512xf32>
    %9 = arith.addf %6, %8 : vector<16x512xf32>
    %10 = arith.truncf %9 : vector<16x512xf32> to vector<16x512xbf16>
    %cst_12 = arith.constant 0.000000e+00 : bf16
    %11 = vector.broadcast %cst_12 : bf16 to vector<16x512xbf16>
    %12 = arith.maximumf %10, %11 : vector<16x512xbf16>
    %c0_13 = arith.constant 0 : index
    %c0_14 = arith.constant 0 : index
    %13 = vector.load %arg4[%c0_13, %c0_14] : memref<512x256xbf16, #tpu.memory_space<vmem>>, vector<512x256xbf16>
    %cst_15 = arith.constant dense<0.000000e+00> : vector<16x256xf32>
    %14 = tpu.matmul %12, %13, %cst_15 {dimension_numbers = #tpu.dot_dimension_numbers<[1], [0], [0], [1], [0, 0, 1, 1], [], []>} : vector<16x512xbf16>, vector<512x256xbf16>, vector<16x256xf32> -> vector<16x256xf32>
    %c0_16 = arith.constant 0 : index
    %c0_17 = arith.constant 0 : index
    %15 = vector.load %arg5[%c0_16, %c0_17] : memref<1x256xf32, #tpu.memory_space<vmem>>, vector<1x256xf32>
    %16 = vector.broadcast %15 : vector<1x256xf32> to vector<16x256xf32>
    %17 = arith.addf %14, %16 : vector<16x256xf32>
    %18 = arith.truncf %17 : vector<16x256xf32> to vector<16x256xbf16>
    %cst_18 = arith.constant 0.000000e+00 : bf16
    %19 = vector.broadcast %cst_18 : bf16 to vector<16x256xbf16>
    %20 = arith.maximumf %18, %19 : vector<16x256xbf16>
    %c0_19 = arith.constant 0 : index
    %c0_20 = arith.constant 0 : index
    %21 = vector.load %arg6[%c0_19, %c0_20] : memref<256x128xbf16, #tpu.memory_space<vmem>>, vector<256x128xbf16>
    %cst_21 = arith.constant dense<0.000000e+00> : vector<16x128xf32>
    %22 = tpu.matmul %20, %21, %cst_21 {dimension_numbers = #tpu.dot_dimension_numbers<[1], [0], [0], [1], [0, 0, 1, 1], [], []>} : vector<16x256xbf16>, vector<256x128xbf16>, vector<16x128xf32> -> vector<16x128xf32>
    %c0_22 = arith.constant 0 : index
    %c0_23 = arith.constant 0 : index
    %23 = vector.load %arg7[%c0_22, %c0_23] : memref<1x128xf32, #tpu.memory_space<vmem>>, vector<1x128xf32>
    %24 = vector.broadcast %23 : vector<1x128xf32> to vector<16x128xf32>
    %25 = arith.addf %22, %24 : vector<16x128xf32>
    %26 = arith.truncf %25 : vector<16x128xf32> to vector<16x128xbf16>
    %cst_24 = arith.constant 0.000000e+00 : bf16
    %27 = vector.broadcast %cst_24 : bf16 to vector<16x128xbf16>
    %28 = arith.maximumf %26, %27 : vector<16x128xbf16>
    %c0_25 = arith.constant 0 : index
    %c0_26 = arith.constant 0 : index
    %29 = vector.load %arg8[%c0_25, %c0_26] : memref<128x128xbf16, #tpu.memory_space<vmem>>, vector<128x128xbf16>
    %cst_27 = arith.constant dense<0.000000e+00> : vector<16x128xf32>
    %30 = tpu.matmul %28, %29, %cst_27 {dimension_numbers = #tpu.dot_dimension_numbers<[1], [0], [0], [1], [0, 0, 1, 1], [], []>} : vector<16x128xbf16>, vector<128x128xbf16>, vector<16x128xf32> -> vector<16x128xf32>
    %c0_28 = arith.constant 0 : index
    %c0_29 = arith.constant 0 : index
    %31 = vector.load %arg9[%c0_28, %c0_29] : memref<1x128xf32, #tpu.memory_space<vmem>>, vector<1x128xf32>
    %32 = vector.broadcast %31 : vector<1x128xf32> to vector<16x128xf32>
    %33 = arith.addf %30, %32 : vector<16x128xf32>
    %c0_30 = arith.constant 0 : index
    %c0_31 = arith.constant 0 : index
    %34 = vector.load %arg10[%c0_30, %c0_31] : memref<16x128xf32, #tpu.memory_space<vmem>>, vector<16x128xf32>
    tpu.vector_store %arg10[%c0_30, %c0_31], %33 {strides = array<i32>} : memref<16x128xf32, #tpu.memory_space<vmem>>, vector<16x128xf32>,
    return
  }
  func.func @transform_0(%arg0: i32) -> (i32, i32) {
    %c0_i32 = arith.constant 0 : i32
    %c0_i32_0 = arith.constant 0 : i32
    return %arg0, %c0_i32 : i32, i32
  }
  func.func @transform_1(%arg0: i32) -> (i32, i32) {
    %c0_i32 = arith.constant 0 : i32
    %c0_i32_0 = arith.constant 0 : i32
    %c0_i32_1 = arith.constant 0 : i32
    return %c0_i32, %c0_i32_0 : i32, i32
  }
  func.func @transform_2(%arg0: i32) -> (i32, i32) {
    %c0_i32 = arith.constant 0 : i32
    %c0_i32_0 = arith.constant 0 : i32
    %c0_i32_1 = arith.constant 0 : i32
    return %c0_i32, %c0_i32_0 : i32, i32
  }
  func.func @transform_3(%arg0: i32) -> (i32, i32) {
    %c0_i32 = arith.constant 0 : i32
    %c0_i32_0 = arith.constant 0 : i32
    %c0_i32_1 = arith.constant 0 : i32
    return %c0_i32, %c0_i32_0 : i32, i32
  }
  func.func @transform_4(%arg0: i32) -> (i32, i32) {
    %c0_i32 = arith.constant 0 : i32
    %c0_i32_0 = arith.constant 0 : i32
    %c0_i32_1 = arith.constant 0 : i32
    return %c0_i32, %c0_i32_0 : i32, i32
  }
  func.func @transform_5(%arg0: i32) -> (i32, i32) {
    %c0_i32 = arith.constant 0 : i32
    %c0_i32_0 = arith.constant 0 : i32
    %c0_i32_1 = arith.constant 0 : i32
    return %c0_i32, %c0_i32_0 : i32, i32
  }
  func.func @transform_6(%arg0: i32) -> (i32, i32) {
    %c0_i32 = arith.constant 0 : i32
    %c0_i32_0 = arith.constant 0 : i32
    %c0_i32_1 = arith.constant 0 : i32
    return %c0_i32, %c0_i32_0 : i32, i32
  }
  func.func @transform_7(%arg0: i32) -> (i32, i32) {
    %c0_i32 = arith.constant 0 : i32
    %c0_i32_0 = arith.constant 0 : i32
    %c0_i32_1 = arith.constant 0 : i32
    return %c0_i32, %c0_i32_0 : i32, i32
  }
  func.func @transform_8(%arg0: i32) -> (i32, i32) {
    %c0_i32 = arith.constant 0 : i32
    %c0_i32_0 = arith.constant 0 : i32
    %c0_i32_1 = arith.constant 0 : i32
    return %c0_i32, %c0_i32_0 : i32, i32
  }
  func.func @transform_9(%arg0: i32) -> (i32, i32) {
    %c0_i32 = arith.constant 0 : i32
    %c0_i32_0 = arith.constant 0 : i32
    return %arg0, %c0_i32 : i32, i32
  }
}

</mosaic_0001>

<llo_original>
// kernel: state_based_q_network.1
$region0: #{state_based_q_network.1}
  #allocation0 [shape = 'u32[]', space=smem, size = 0x4, offset = 0x4, fixed_abs, tag = 'smem constant byte address 0x4 - core index']
  #allocation1 [shape = 'u32[144,128]{1,0:T(1,128)}', space=vmem, size = 0x12000, scoped, tag = 'internal scratch']
  #allocation2 [shape = 'bf16[16,128]{1,0:T(16,128)(2,1)}', space=vmem, size = 0x1000, scoped, tag = 'scratch operand']
  %s0 = inlined_call_operand.vmem [shape: bf16[16,37], index: 0, kind: input, shape index: {}]
  %s1 = inlined_call_operand.hbm [shape: bf16[128,512], index: 1, kind: input, shape index: {}]
  %s2 = inlined_call_operand.vmem [shape: f32[1,512], index: 2, kind: input, shape index: {}]
  %s3 = inlined_call_operand.hbm [shape: bf16[512,256], index: 3, kind: input, shape index: {}]
  %s4 = inlined_call_operand.vmem [shape: f32[1,256], index: 4, kind: input, shape index: {}]
  %s5 = inlined_call_operand.hbm [shape: bf16[256,128], index: 5, kind: input, shape index: {}]
  %s6 = inlined_call_operand.vmem [shape: f32[1,128], index: 6, kind: input, shape index: {}]
  %s7 = inlined_call_operand.hbm [shape: bf16[128,128], index: 7, kind: input, shape index: {}]
  %s8 = inlined_call_operand.vmem [shape: f32[1,128], index: 8, kind: input, shape index: {}]
  %s9 = inlined_call_operand.vmem [shape: f32[16,128], index: 9, kind: output, shape index: {}]
  %s10 = sld [smem:[#allocation0]]
  $region62: #{state_based_q_network.1} parent=0
    _
  %s12 = ssub.s32 1, %s10
  %s13 = scalar_select 0, %s12, %s10
  $region1: #{state_based_q_network.1} parent=0
    #allocation3 [shape = 'u8[131072]{0}', space=vmem, size = 0x20000, scoped, tag = 'input window, operand 1, single buffered']
    #allocation4 [shape = 's32[1]{0}', space=sflag, size = 0x4, scoped, tag = 'scoped memory for state_based_q_network.1']
    #allocation5 [shape = 'u8[262144]{0}', space=vmem, size = 0x40000, scoped, tag = 'input window, operand 3, single buffered']
    #allocation6 [shape = 's32[1]{0}', space=sflag, size = 0x4, scoped, tag = 'scoped memory for state_based_q_network.1']
    #allocation7 [shape = 'u8[65536]{0}', space=vmem, size = 0x10000, scoped, tag = 'input window, operand 5, single buffered']
    #allocation8 [shape = 'u8[32768]{0}', space=vmem, size = 0x8000, scoped, tag = 'input window, operand 7, single buffered']
    #allocation9 [shape = 's32[1]{0}', space=sflag, size = 0x4, scoped, tag = 'scoped memory for state_based_q_network.1']
    %14 = vsyncpa [#allocation4], 0
    %15 = vsyncpa [#allocation6], 0
    %16 = vsyncpa [#allocation9], 0
    // Predicated region
    $region2: #{state_based_q_network.1} parent=1 // pred_check
      _
    $region3: #{state_based_q_network.1} parent=1 // pred_check_branch
      %18 = sbr.rel (0) target = $region5
    $region4: #{state_based_q_network.1} parent=1 // pred_region
      _
    $region5: #{state_based_q_network.1} parent=1 // pred_fallthru
      _
    // Predicated region
    $region6: #{state_based_q_network.1} parent=1 // pred_check
      _
    $region7: #{state_based_q_network.1} parent=1 // pred_check_branch
      %20 = sbr.rel (0) target = $region9
    $region8: #{state_based_q_network.1} parent=1 // pred_region
      %s22 = ssub.s32 4096, 4096
      %23 = vsyncadd [#allocation4], %s22
      %s24 = sshll.u32 [#allocation3], 4
      %s25 = int_to_ptr.vmem [resolvable:$true] %s24
      %30 = dma.hbm_to_vmem [thread:$0]  %s1, 4096, %s25, [#allocation4], 256, 256, 16
    $region9: #{state_based_q_network.1} parent=1 // pred_fallthru
      _
    // Predicated region
    $region10: #{state_based_q_network.1} parent=1 // pred_check
      _
    $region11: #{state_based_q_network.1} parent=1 // pred_check_branch
      %32 = sbr.rel (0) target = $region13
    $region12: #{state_based_q_network.1} parent=1 // pred_region
      _
    $region13: #{state_based_q_network.1} parent=1 // pred_fallthru
      _
    // Predicated region
    $region14: #{state_based_q_network.1} parent=1 // pred_check
      _
    $region15: #{state_based_q_network.1} parent=1 // pred_check_branch
      %34 = sbr.rel (0) target = $region17
    $region16: #{state_based_q_network.1} parent=1 // pred_region
      %s36 = ssub.s32 8192, 8192
      %37 = vsyncadd [#allocation6], %s36
      %s38 = sshll.u32 [#allocation5], 4
      %s39 = int_to_ptr.vmem [resolvable:$true] %s38
      %44 = dma.hbm_to_vmem [thread:$0]  %s3, 8192, %s39, [#allocation6], 128, 128, 8
    $region17: #{state_based_q_network.1} parent=1 // pred_fallthru
      _
    // Predicated region
    $region18: #{state_based_q_network.1} parent=1 // pred_check
      _
    $region19: #{state_based_q_network.1} parent=1 // pred_check_branch
      %46 = sbr.rel (0) target = $region21
    $region20: #{state_based_q_network.1} parent=1 // pred_region
      _
    $region21: #{state_based_q_network.1} parent=1 // pred_fallthru
      _
    // Predicated region
    $region22: #{state_based_q_network.1} parent=1 // pred_check
      _
    $region23: #{state_based_q_network.1} parent=1 // pred_check_branch
      %48 = sbr.rel (0) target = $region25
    $region24: #{state_based_q_network.1} parent=1 // pred_region
      %s50 = ssub.s32 2048, 2048
      %51 = vsyncadd [#allocation6], %s50
      %s52 = sshll.u32 [#allocation7], 4
      %s53 = int_to_ptr.vmem [resolvable:$true] %s52
      %58 = dma.hbm_to_vmem [thread:$0]  %s5, 2048, %s53, [#allocation6], 64, 64, 4
    $region25: #{state_based_q_network.1} parent=1 // pred_fallthru
      _
    // Predicated region
    $region26: #{state_based_q_network.1} parent=1 // pred_check
      _
    $region27: #{state_based_q_network.1} parent=1 // pred_check_branch
      %60 = sbr.rel (0) target = $region29
    $region28: #{state_based_q_network.1} parent=1 // pred_region
      _
    $region29: #{state_based_q_network.1} parent=1 // pred_fallthru
      _
    // Predicated region
    $region30: #{state_based_q_network.1} parent=1 // pred_check
      _
    $region31: #{state_based_q_network.1} parent=1 // pred_check_branch
      %62 = sbr.rel (0) target = $region33
    $region32: #{state_based_q_network.1} parent=1 // pred_region
      %s64 = ssub.s32 1024, 1024
      %65 = vsyncadd [#allocation9], %s64
      %s66 = sshll.u32 [#allocation8], 4
      %s67 = int_to_ptr.vmem [resolvable:$true] %s66
      %72 = dma.hbm_to_vmem [thread:$0]  %s7, 1024, %s67, [#allocation9], 64, 64, 4
    $region33: #{state_based_q_network.1} parent=1 // pred_fallthru
      _
    // Predicated region
    $region34: #{state_based_q_network.1} parent=1 // pred_check
      _
    $region35: #{state_based_q_network.1} parent=1 // pred_check_branch
      %74 = sbr.rel (0) target = $region37
    $region36: #{state_based_q_network.1} parent=1 // pred_region
      _
    $region37: #{state_based_q_network.1} parent=1 // pred_fallthru
      _
    // Predicated region
    $region38: #{state_based_q_network.1} parent=1 // pred_check
      _
    $region39: #{state_based_q_network.1} parent=1 // pred_check_branch
      %76 = sbr.rel (0) target = $region41
    $region40: #{state_based_q_network.1} parent=1 // pred_region
      %77 = dma.done [#allocation4], 4096
    $region41: #{state_based_q_network.1} parent=1 // pred_fallthru
      _
    // Predicated region
    $region42: #{state_based_q_network.1} parent=1 // pred_check
      _
    $region43: #{state_based_q_network.1} parent=1 // pred_check_branch
      %79 = sbr.rel (0) target = $region45
    $region44: #{state_based_q_network.1} parent=1 // pred_region
      %80 = dma.done [#allocation6], 8192
    $region45: #{state_based_q_network.1} parent=1 // pred_fallthru
      _
    // Predicated region
    $region46: #{state_based_q_network.1} parent=1 // pred_check
      _
    $region47: #{state_based_q_network.1} parent=1 // pred_check_branch
      %82 = sbr.rel (0) target = $region49
    $region48: #{state_based_q_network.1} parent=1 // pred_region
      %83 = dma.done [#allocation6], 2048
    $region49: #{state_based_q_network.1} parent=1 // pred_fallthru
      _
    // Predicated region
    $region50: #{state_based_q_network.1} parent=1 // pred_check
      _
    $region51: #{state_based_q_network.1} parent=1 // pred_check_branch
      %85 = sbr.rel (0) target = $region53
    $region52: #{state_based_q_network.1} parent=1 // pred_region
      %86 = dma.done [#allocation9], 1024
    $region53: #{state_based_q_network.1} parent=1 // pred_fallthru
      _
    %88 = vst [vmem:[#allocation2] sm:$0xff] 0
    %v89 = vld [vmem:[%s0] sm:$0xf]
    %v90 = vld [vmem:[%s0 + $0x4] sm:$0xf]
    %v93 = vunpack.c.l.b16 %v89
    %v94 = vunpack.c.l.b16 %v90
    %v95 = vpack.c.b16 %v94, %v93
    %vm97 = vcmask 302080
    %98 = vst.msk [vmem:[#allocation2] sm:$0xff] %vm97, %v95
    %v99 = vld [vmem:[#allocation2] sm:$0xff]
    %v100 = vld [vmem:[#allocation3] sm:$0xff]
    %v101 = vld [vmem:[#allocation3 + $0x8] sm:$0xff]
    %v102 = vld [vmem:[#allocation3 + $0x10] sm:$0xff]
    %v103 = vld [vmem:[#allocation3 + $0x18] sm:$0xff]
    %v104 = vld [vmem:[#allocation3 + $0x20] sm:$0xff]
    %v105 = vld [vmem:[#allocation3 + $0x28] sm:$0xff]
    %v106 = vld [vmem:[#allocation3 + $0x30] sm:$0xff]
    %v107 = vld [vmem:[#allocation3 + $0x38] sm:$0xff]
    %v108 = vld [vmem:[#allocation3 + $0x40] sm:$0xff]
    %v109 = vld [vmem:[#allocation3 + $0x48] sm:$0xff]
    %v110 = vld [vmem:[#allocation3 + $0x50] sm:$0xff]
    %v111 = vld [vmem:[#allocation3 + $0x58] sm:$0xff]
    %v112 = vld [vmem:[#allocation3 + $0x60] sm:$0xff]
    %v113 = vld [vmem:[#allocation3 + $0x68] sm:$0xff]
    %v114 = vld [vmem:[#allocation3 + $0x70] sm:$0xff]
    %v115 = vld [vmem:[#allocation3 + $0x78] sm:$0xff]
    %v116 = vld [vmem:[#allocation3 + $0x80] sm:$0xff]
    %v117 = vld [vmem:[#allocation3 + $0x88] sm:$0xff]
    %v118 = vld [vmem:[#allocation3 + $0x90] sm:$0xff]
    %v119 = vld [vmem:[#allocation3 + $0x98] sm:$0xff]
    %v120 = vld [vmem:[#allocation3 + $0xa0] sm:$0xff]
    %v121 = vld [vmem:[#allocation3 + $0xa8] sm:$0xff]
    %v122 = vld [vmem:[#allocation3 + $0xb0] sm:$0xff]
    %v123 = vld [vmem:[#allocation3 + $0xb8] sm:$0xff]
    %v124 = vld [vmem:[#allocation3 + $0xc0] sm:$0xff]
    %v125 = vld [vmem:[#allocation3 + $0xc8] sm:$0xff]
    %v126 = vld [vmem:[#allocation3 + $0xd0] sm:$0xff]
    %v127 = vld [vmem:[#allocation3 + $0xd8] sm:$0xff]
    %v128 = vld [vmem:[#allocation3 + $0xe0] sm:$0xff]
    %v129 = vld [vmem:[#allocation3 + $0xe8] sm:$0xff]
    %v130 = vld [vmem:[#allocation3 + $0xf0] sm:$0xff]
    %v131 = vld [vmem:[#allocation3 + $0xf8] sm:$0xff]
    %v132 = vld [vmem:[%s2] sm:$0xf]
    %v134 = vlaneseq
    %v135 = vshrl.u32 %v134, 7
    %v136 = vsub.s32 0, %v135
    %v137 = vrot.slane %v132, %v136
    %v138 = vlaneseq
    %v139 = vshrl.u32 %v138, 7
    %v140 = vsub.s32 1, %v139
    %v141 = vrot.slane %v132, %v140
    %v142 = vlaneseq
    %v143 = vshrl.u32 %v142, 7
    %v144 = vsub.s32 2, %v143
    %v145 = vrot.slane %v132, %v144
    %v146 = vlaneseq
    %v147 = vshrl.u32 %v146, 7
    %v148 = vsub.s32 3, %v147
    %v149 = vrot.slane %v132, %v148
    %v186 = vunpack.c.l.b16 %v100
    %v187 = vunpack.c.h.b16 %v100
    %v188 = vunpack.c.l.b16 %v101
    %v189 = vunpack.c.h.b16 %v101
    %v190 = vunpack.c.l.b16 %v102
    %v191 = vunpack.c.h.b16 %v102
    %v192 = vunpack.c.l.b16 %v103
    %v193 = vunpack.c.h.b16 %v103
    %v194 = vunpack.c.l.b16 %v104
    %v195 = vunpack.c.h.b16 %v104
    %v196 = vunpack.c.l.b16 %v105
    %v197 = vunpack.c.h.b16 %v105
    %v198 = vunpack.c.l.b16 %v106
    %v199 = vunpack.c.h.b16 %v106
    %v200 = vunpack.c.l.b16 %v107
    %v201 = vunpack.c.h.b16 %v107
    %v202 = vunpack.c.l.b16 %v108
    %v203 = vunpack.c.h.b16 %v108
    %v204 = vunpack.c.l.b16 %v109
    %v205 = vunpack.c.h.b16 %v109
    %v206 = vunpack.c.l.b16 %v110
    %v207 = vunpack.c.h.b16 %v110
    %v208 = vunpack.c.l.b16 %v111
    %v209 = vunpack.c.h.b16 %v111
    %v210 = vunpack.c.l.b16 %v112
    %v211 = vunpack.c.h.b16 %v112
    %v212 = vunpack.c.l.b16 %v113
    %v213 = vunpack.c.h.b16 %v113
    %v214 = vunpack.c.l.b16 %v114
    %v215 = vunpack.c.h.b16 %v114
    %v216 = vunpack.c.l.b16 %v115
    %v217 = vunpack.c.h.b16 %v115
    %v218 = vunpack.c.l.b16 %v116
    %v219 = vunpack.c.h.b16 %v116
    %v220 = vunpack.c.l.b16 %v117
    %v221 = vunpack.c.h.b16 %v117
    %v222 = vunpack.c.l.b16 %v118
    %v223 = vunpack.c.h.b16 %v118
    %v224 = vunpack.c.l.b16 %v119
    %v225 = vunpack.c.h.b16 %v119
    %v226 = vunpack.c.l.b16 %v120
    %v227 = vunpack.c.h.b16 %v120
    %v228 = vunpack.c.l.b16 %v121
    %v229 = vunpack.c.h.b16 %v121
    %v230 = vunpack.c.l.b16 %v122
    %v231 = vunpack.c.h.b16 %v122
    %v232 = vunpack.c.l.b16 %v123
    %v233 = vunpack.c.h.b16 %v123
    %v234 = vunpack.c.l.b16 %v124
    %v235 = vunpack.c.h.b16 %v124
    %v236 = vunpack.c.l.b16 %v125
    %v237 = vunpack.c.h.b16 %v125
    %v238 = vunpack.c.l.b16 %v126
    %v239 = vunpack.c.h.b16 %v126
    %v240 = vunpack.c.l.b16 %v127
    %v241 = vunpack.c.h.b16 %v127
    %v242 = vunpack.c.l.b16 %v128
    %v243 = vunpack.c.h.b16 %v128
    %v244 = vunpack.c.l.b16 %v129
    %v245 = vunpack.c.h.b16 %v129
    %v246 = vunpack.c.l.b16 %v130
    %v247 = vunpack.c.h.b16 %v130
    %v248 = vunpack.c.l.b16 %v131
    %v249 = vunpack.c.h.b16 %v131
    %v250 = vpack.c.b16 %v190, %v186
    %v251 = vpack.c.b16 %v191, %v187
    %v252 = vpack.c.b16 %v192, %v188
    %v253 = vpack.c.b16 %v193, %v189
    %v254 = vpack.c.b16 %v198, %v194
    %v255 = vpack.c.b16 %v199, %v195
    %v256 = vpack.c.b16 %v200, %v196
    %v257 = vpack.c.b16 %v201, %v197
    %v258 = vpack.c.b16 %v206, %v202
    %v259 = vpack.c.b16 %v207, %v203
    %v260 = vpack.c.b16 %v208, %v204
    %v261 = vpack.c.b16 %v209, %v205
    %v262 = vpack.c.b16 %v214, %v210
    %v263 = vpack.c.b16 %v215, %v211
    %v264 = vpack.c.b16 %v216, %v212
    %v265 = vpack.c.b16 %v217, %v213
    %v266 = vpack.c.b16 %v222, %v218
    %v267 = vpack.c.b16 %v223, %v219
    %v268 = vpack.c.b16 %v224, %v220
    %v269 = vpack.c.b16 %v225, %v221
    %v270 = vpack.c.b16 %v230, %v226
    %v271 = vpack.c.b16 %v231, %v227
    %v272 = vpack.c.b16 %v232, %v228
    %v273 = vpack.c.b16 %v233, %v229
    %v274 = vpack.c.b16 %v238, %v234
    %v275 = vpack.c.b16 %v239, %v235
    %v276 = vpack.c.b16 %v240, %v236
    %v277 = vpack.c.b16 %v241, %v237
    %v278 = vpack.c.b16 %v246, %v242
    %v279 = vpack.c.b16 %v247, %v243
    %v280 = vpack.c.b16 %v248, %v244
    %v281 = vpack.c.b16 %v249, %v245
    %314 = vmatprep.subr.bf16.mxu0 %v251
    %315 = vmatpush1.bf16.msra.mxu0 %v250
    %316 = vmatprep.subr.bf16.mxu0 %v255
    %317 = vmatpush1.bf16.msra.mxu0 %v254
    %318 = vmatprep.subr.bf16.mxu0 %v259
    %319 = vmatpush1.bf16.msra.mxu0 %v258
    %320 = vmatprep.subr.bf16.mxu0 %v263
    %321 = vmatpush1.bf16.msra.mxu0 %v262
    %322 = vmatprep.subr.bf16.mxu0 %v267
    %323 = vmatpush1.bf16.msra.mxu0 %v266
    %324 = vmatprep.subr.bf16.mxu0 %v271
    %325 = vmatpush1.bf16.msra.mxu0 %v270
    %326 = vmatprep.subr.bf16.mxu0 %v275
    %327 = vmatpush1.bf16.msra.mxu0 %v274
    %328 = vmatprep.subr.bf16.mxu0 %v279
    %329 = vmatpush1.bf16.msra.mxu0 %v278
    %330 = vmatprep.subr.bf16.mxu0 0
    %331 = vmatpush1.bf16.msra.mxu0 0
    %332 = vmatprep.subr.bf16.mxu0 0
    %333 = vmatpush1.bf16.msra.mxu0 0
    %334 = vmatprep.subr.bf16.mxu0 0
    %335 = vmatpush1.bf16.msra.mxu0 0
    %336 = vmatprep.subr.bf16.mxu0 0
    %337 = vmatpush1.bf16.msra.mxu0 0
    %338 = vmatprep.subr.bf16.mxu0 0
    %339 = vmatpush1.bf16.msra.mxu0 0
    %340 = vmatprep.subr.bf16.mxu0 0
    %341 = vmatpush1.bf16.msra.mxu0 0
    %342 = vmatprep.subr.bf16.mxu0 0
    %343 = vmatpush1.bf16.msra.mxu0 0
    %344 = vmatprep.subr.bf16.mxu0 0
    %345 = vmatpush1.bf16.msra.mxu0 0
    %346 = vmatprep.mubr.bf16.mxu0 0
    %347 = vmatmul.mubr.bf16.gmra.mrb[0].mxu0 %v99
    %v348 = vpop.f32.mrb[0].mxu0
    %v349 = vadd.f32 %v137, %v348
    %v350 = vpop.f32.mrb[0].mxu0
    %v351 = vadd.f32 %v141, %v350
    %v352 = vpop.f32.mrb[0].mxu0
    %v353 = vadd.f32 %v137, %v352
    %v354 = vpop.f32.mrb[0].mxu0
    %v355 = vadd.f32 %v141, %v354
    %356 = vdwg.mxu0
    %357 = vmatprep.subr.bf16.mxu0 %v253
    %358 = vmatpush1.bf16.msra.mxu0 %v252
    %359 = vmatprep.subr.bf16.mxu0 %v257
    %360 = vmatpush1.bf16.msra.mxu0 %v256
    %361 = vmatprep.subr.bf16.mxu0 %v261
    %362 = vmatpush1.bf16.msra.mxu0 %v260
    %363 = vmatprep.subr.bf16.mxu0 %v265
    %364 = vmatpush1.bf16.msra.mxu0 %v264
    %365 = vmatprep.subr.bf16.mxu0 %v269
    %366 = vmatpush1.bf16.msra.mxu0 %v268
    %367 = vmatprep.subr.bf16.mxu0 %v273
    %368 = vmatpush1.bf16.msra.mxu0 %v272
    %369 = vmatprep.subr.bf16.mxu0 %v277
    %370 = vmatpush1.bf16.msra.mxu0 %v276
    %371 = vmatprep.subr.bf16.mxu0 %v281
    %372 = vmatpush1.bf16.msra.mxu0 %v280
    %373 = vmatprep.subr.bf16.mxu0 0
    %374 = vmatpush1.bf16.msra.mxu0 0
    %375 = vmatprep.subr.bf16.mxu0 0
    %376 = vmatpush1.bf16.msra.mxu0 0
    %377 = vmatprep.subr.bf16.mxu0 0
    %378 = vmatpush1.bf16.msra.mxu0 0
    %379 = vmatprep.subr.bf16.mxu0 0
    %380 = vmatpush1.bf16.msra.mxu0 0
    %381 = vmatprep.subr.bf16.mxu0 0
    %382 = vmatpush1.bf16.msra.mxu0 0
    %383 = vmatprep.subr.bf16.mxu0 0
    %384 = vmatpush1.bf16.msra.mxu0 0
    %385 = vmatprep.subr.bf16.mxu0 0
    %386 = vmatpush1.bf16.msra.mxu0 0
    %387 = vmatprep.subr.bf16.mxu0 0
    %388 = vmatpush1.bf16.msra.mxu0 0
    %389 = vmatprep.mubr.bf16.mxu0 0
    %390 = vmatmul.mubr.bf16.gmra.mrb[0].mxu0 %v99
    %v391 = vpop.f32.mrb[0].mxu0
    %v392 = vadd.f32 %v145, %v391
    %v393 = vpop.f32.mrb[0].mxu0
    %v394 = vadd.f32 %v149, %v393
    %v395 = vpop.f32.mrb[0].mxu0
    %v396 = vadd.f32 %v145, %v395
    %v397 = vpop.f32.mrb[0].mxu0
    %v398 = vadd.f32 %v149, %v397
    %399 = vdwg.mxu0
    %v400 = vpack.c.bf16 %v353, %v349
    %v401 = vpack.c.bf16 %v355, %v351
    %v402 = vpack.c.bf16 %v396, %v392
    %v403 = vpack.c.bf16 %v398, %v394
    %v404 = vmax.bf16 %v400, 0
    %v405 = vmax.bf16 %v401, 0
    %v406 = vmax.bf16 %v402, 0
    %v407 = vmax.bf16 %v403, 0
    %v408 = vld [vmem:[#allocation5] sm:$0xff]
    %v409 = vld [vmem:[#allocation5 + $0x8] sm:$0xff]
    %v410 = vld [vmem:[#allocation5 + $0x10] sm:$0xff]
    %v411 = vld [vmem:[#allocation5 + $0x18] sm:$0xff]
    %v412 = vld [vmem:[#allocation5 + $0x20] sm:$0xff]
    %v413 = vld [vmem:[#allocation5 + $0x28] sm:$0xff]
    %v414 = vld [vmem:[#allocation5 + $0x30] sm:$0xff]
    %v415 = vld [vmem:[#allocation5 + $0x38] sm:$0xff]
    %v416 = vld [vmem:[#allocation5 + $0x40] sm:$0xff]
    %v417 = vld [vmem:[#allocation5 + $0x48] sm:$0xff]
    %v418 = vld [vmem:[#allocation5 + $0x50] sm:$0xff]
    %v419 = vld [vmem:[#allocation5 + $0x58] sm:$0xff]
    %v420 = vld [vmem:[#allocation5 + $0x60] sm:$0xff]
    %v421 = vld [vmem:[#allocation5 + $0x68] sm:$0xff]
    %v422 = vld [vmem:[#allocation5 + $0x70] sm:$0xff]
    %v423 = vld [vmem:[#allocation5 + $0x78] sm:$0xff]
    %v424 = vld [vmem:[#allocation5 + $0x80] sm:$0xff]
    %v425 = vld [vmem:[#allocation5 + $0x88] sm:$0xff]
    %v426 = vld [vmem:[#allocation5 + $0x90] sm:$0xff]
    %v427 = vld [vmem:[#allocation5 + $0x98] sm:$0xff]
    %v428 = vld [vmem:[#allocation5 + $0xa0] sm:$0xff]
    %v429 = vld [vmem:[#allocation5 + $0xa8] sm:$0xff]
    %v430 = vld [vmem:[#allocation5 + $0xb0] sm:$0xff]
    %v431 = vld [vmem:[#allocation5 + $0xb8] sm:$0xff]
    %v432 = vld [vmem:[#allocation5 + $0xc0] sm:$0xff]
    %v433 = vld [vmem:[#allocation5 + $0xc8] sm:$0xff]
    %v434 = vld [vmem:[#allocation5 + $0xd0] sm:$0xff]
    %v435 = vld [vmem:[#allocation5 + $0xd8] sm:$0xff]
    %v436 = vld [vmem:[#allocation5 + $0xe0] sm:$0xff]
    %v437 = vld [vmem:[#allocation5 + $0xe8] sm:$0xff]
    %v438 = vld [vmem:[#allocation5 + $0xf0] sm:$0xff]
    %v439 = vld [vmem:[#allocation5 + $0xf8] sm:$0xff]
    %v440 = vld [vmem:[#allocation5 + $0x100] sm:$0xff]
    %v441 = vld [vmem:[#allocation5 + $0x108] sm:$0xff]
    %v442 = vld [vmem:[#allocation5 + $0x110] sm:$0xff]
    %v443 = vld [vmem:[#allocation5 + $0x118] sm:$0xff]
    %v444 = vld [vmem:[#allocation5 + $0x120] sm:$0xff]
    %v445 = vld [vmem:[#allocation5 + $0x128] sm:$0xff]
    %v446 = vld [vmem:[#allocation5 + $0x130] sm:$0xff]
    %v447 = vld [vmem:[#allocation5 + $0x138] sm:$0xff]
    %v448 = vld [vmem:[#allocation5 + $0x140] sm:$0xff]
    %v449 = vld [vmem:[#allocation5 + $0x148] sm:$0xff]
    %v450 = vld [vmem:[#allocation5 + $0x150] sm:$0xff]
    %v451 = vld [vmem:[#allocation5 + $0x158] sm:$0xff]
    %v452 = vld [vmem:[#allocation5 + $0x160] sm:$0xff]
    %v453 = vld [vmem:[#allocation5 + $0x168] sm:$0xff]
    %v454 = vld [vmem:[#allocation5 + $0x170] sm:$0xff]
    %v455 = vld [vmem:[#allocation5 + $0x178] sm:$0xff]
    %v456 = vld [vmem:[#allocation5 + $0x180] sm:$0xff]
    %v457 = vld [vmem:[#allocation5 + $0x188] sm:$0xff]
    %v458 = vld [vmem:[#allocation5 + $0x190] sm:$0xff]
    %v459 = vld [vmem:[#allocation5 + $0x198] sm:$0xff]
    %v460 = vld [vmem:[#allocation5 + $0x1a0] sm:$0xff]
    %v461 = vld [vmem:[#allocation5 + $0x1a8] sm:$0xff]
    %v462 = vld [vmem:[#allocation5 + $0x1b0] sm:$0xff]
    %v463 = vld [vmem:[#allocation5 + $0x1b8] sm:$0xff]
    %v464 = vld [vmem:[#allocation5 + $0x1c0] sm:$0xff]
    %v465 = vld [vmem:[#allocation5 + $0x1c8] sm:$0xff]
    %v466 = vld [vmem:[#allocation5 + $0x1d0] sm:$0xff]
    %v467 = vld [vmem:[#allocation5 + $0x1d8] sm:$0xff]
    %v468 = vld [vmem:[#allocation5 + $0x1e0] sm:$0xff]
    %v469 = vld [vmem:[#allocation5 + $0x1e8] sm:$0xff]
    %v470 = vld [vmem:[#allocation5 + $0x1f0] sm:$0xff]
    %v471 = vld [vmem:[#allocation5 + $0x1f8] sm:$0xff]
    %v472 = vld [vmem:[%s4] sm:$0x3]
    %v474 = vlaneseq
    %v475 = vshrl.u32 %v474, 7
    %v476 = vsub.s32 0, %v475
    %v477 = vrot.slane %v472, %v476
    %v478 = vlaneseq
    %v479 = vshrl.u32 %v478, 7
    %v480 = vsub.s32 1, %v479
    %v481 = vrot.slane %v472, %v480
    %v548 = vunpack.c.l.b16 %v408
    %v549 = vunpack.c.h.b16 %v408
    %v550 = vunpack.c.l.b16 %v409
    %v551 = vunpack.c.h.b16 %v409
    %v552 = vunpack.c.l.b16 %v410
    %v553 = vunpack.c.h.b16 %v410
    %v554 = vunpack.c.l.b16 %v411
    %v555 = vunpack.c.h.b16 %v411
    %v556 = vunpack.c.l.b16 %v412
    %v557 = vunpack.c.h.b16 %v412
    %v558 = vunpack.c.l.b16 %v413
    %v559 = vunpack.c.h.b16 %v413
    %v560 = vunpack.c.l.b16 %v414
    %v561 = vunpack.c.h.b16 %v414
    %v562 = vunpack.c.l.b16 %v415
    %v563 = vunpack.c.h.b16 %v415
    %v564 = vunpack.c.l.b16 %v416
    %v565 = vunpack.c.h.b16 %v416
    %v566 = vunpack.c.l.b16 %v417
    %v567 = vunpack.c.h.b16 %v417
    %v568 = vunpack.c.l.b16 %v418
    %v569 = vunpack.c.h.b16 %v418
    %v570 = vunpack.c.l.b16 %v419
    %v571 = vunpack.c.h.b16 %v419
    %v572 = vunpack.c.l.b16 %v420
    %v573 = vunpack.c.h.b16 %v420
    %v574 = vunpack.c.l.b16 %v421
    %v575 = vunpack.c.h.b16 %v421
    %v576 = vunpack.c.l.b16 %v422
    %v577 = vunpack.c.h.b16 %v422
    %v578 = vunpack.c.l.b16 %v423
    %v579 = vunpack.c.h.b16 %v423
    %v580 = vunpack.c.l.b16 %v424
    %v581 = vunpack.c.h.b16 %v424
    %v582 = vunpack.c.l.b16 %v425
    %v583 = vunpack.c.h.b16 %v425
    %v584 = vunpack.c.l.b16 %v426
    %v585 = vunpack.c.h.b16 %v426
    %v586 = vunpack.c.l.b16 %v427
    %v587 = vunpack.c.h.b16 %v427
    %v588 = vunpack.c.l.b16 %v428
    %v589 = vunpack.c.h.b16 %v428
    %v590 = vunpack.c.l.b16 %v429
    %v591 = vunpack.c.h.b16 %v429
    %v592 = vunpack.c.l.b16 %v430
    %v593 = vunpack.c.h.b16 %v430
    %v594 = vunpack.c.l.b16 %v431
    %v595 = vunpack.c.h.b16 %v431
    %v596 = vunpack.c.l.b16 %v432
    %v597 = vunpack.c.h.b16 %v432
    %v598 = vunpack.c.l.b16 %v433
    %v599 = vunpack.c.h.b16 %v433
    %v600 = vunpack.c.l.b16 %v434
    %v601 = vunpack.c.h.b16 %v434
    %v602 = vunpack.c.l.b16 %v435
    %v603 = vunpack.c.h.b16 %v435
    %v604 = vunpack.c.l.b16 %v436
    %v605 = vunpack.c.h.b16 %v436
    %v606 = vunpack.c.l.b16 %v437
    %v607 = vunpack.c.h.b16 %v437
    %v608 = vunpack.c.l.b16 %v438
    %v609 = vunpack.c.h.b16 %v438
    %v610 = vunpack.c.l.b16 %v439
    %v611 = vunpack.c.h.b16 %v439
    %v612 = vunpack.c.l.b16 %v440
    %v613 = vunpack.c.h.b16 %v440
    %v614 = vunpack.c.l.b16 %v441
    %v615 = vunpack.c.h.b16 %v441
    %v616 = vunpack.c.l.b16 %v442
    %v617 = vunpack.c.h.b16 %v442
    %v618 = vunpack.c.l.b16 %v443
    %v619 = vunpack.c.h.b16 %v443
    %v620 = vunpack.c.l.b16 %v444
    %v621 = vunpack.c.h.b16 %v444
    %v622 = vunpack.c.l.b16 %v445
    %v623 = vunpack.c.h.b16 %v445
    %v624 = vunpack.c.l.b16 %v446
    %v625 = vunpack.c.h.b16 %v446
    %v626 = vunpack.c.l.b16 %v447
    %v627 = vunpack.c.h.b16 %v447
    %v628 = vunpack.c.l.b16 %v448
    %v629 = vunpack.c.h.b16 %v448
    %v630 = vunpack.c.l.b16 %v449
    %v631 = vunpack.c.h.b16 %v449
    %v632 = vunpack.c.l.b16 %v450
    %v633 = vunpack.c.h.b16 %v450
    %v634 = vunpack.c.l.b16 %v451
    %v635 = vunpack.c.h.b16 %v451
    %v636 = vunpack.c.l.b16 %v452
    %v637 = vunpack.c.h.b16 %v452
    %v638 = vunpack.c.l.b16 %v453
    %v639 = vunpack.c.h.b16 %v453
    %v640 = vunpack.c.l.b16 %v454
    %v641 = vunpack.c.h.b16 %v454
    %v642 = vunpack.c.l.b16 %v455
    %v643 = vunpack.c.h.b16 %v455
    %v644 = vunpack.c.l.b16 %v456
    %v645 = vunpack.c.h.b16 %v456
    %v646 = vunpack.c.l.b16 %v457
    %v647 = vunpack.c.h.b16 %v457
    %v648 = vunpack.c.l.b16 %v458
    %v649 = vunpack.c.h.b16 %v458
    %v650 = vunpack.c.l.b16 %v459
    %v651 = vunpack.c.h.b16 %v459
    %v652 = vunpack.c.l.b16 %v460
    %v653 = vunpack.c.h.b16 %v460
    %v654 = vunpack.c.l.b16 %v461
    %v655 = vunpack.c.h.b16 %v461
    %v656 = vunpack.c.l.b16 %v462
    %v657 = vunpack.c.h.b16 %v462
    %v658 = vunpack.c.l.b16 %v463
    %v659 = vunpack.c.h.b16 %v463
    %v660 = vunpack.c.l.b16 %v464
    %v661 = vunpack.c.h.b16 %v464
    %v662 = vunpack.c.l.b16 %v465
    %v663 = vunpack.c.h.b16 %v465
    %v664 = vunpack.c.l.b16 %v466
    %v665 = vunpack.c.h.b16 %v466
    %v666 = vunpack.c.l.b16 %v467
    %v667 = vunpack.c.h.b16 %v467
    %v668 = vunpack.c.l.b16 %v468
    %v669 = vunpack.c.h.b16 %v468
    %v670 = vunpack.c.l.b16 %v469
    %v671 = vunpack.c.h.b16 %v469
    %v672 = vunpack.c.l.b16 %v470
    %v673 = vunpack.c.h.b16 %v470
    %v674 = vunpack.c.l.b16 %v471
    %v675 = vunpack.c.h.b16 %v471
    %v676 = vpack.c.b16 %v550, %v548
    %v677 = vpack.c.b16 %v551, %v549
    %v678 = vpack.c.b16 %v554, %v552
    %v679 = vpack.c.b16 %v555, %v553
    %v680 = vpack.c.b16 %v558, %v556
    %v681 = vpack.c.b16 %v559, %v557
    %v682 = vpack.c.b16 %v562, %v560
    %v683 = vpack.c.b16 %v563, %v561
    %v684 = vpack.c.b16 %v566, %v564
    %v685 = vpack.c.b16 %v567, %v565
    %v686 = vpack.c.b16 %v570, %v568
    %v687 = vpack.c.b16 %v571, %v569
    %v688 = vpack.c.b16 %v574, %v572
    %v689 = vpack.c.b16 %v575, %v573
    %v690 = vpack.c.b16 %v578, %v576
    %v691 = vpack.c.b16 %v579, %v577
    %v692 = vpack.c.b16 %v582, %v580
    %v693 = vpack.c.b16 %v583, %v581
    %v694 = vpack.c.b16 %v586, %v584
    %v695 = vpack.c.b16 %v587, %v585
    %v696 = vpack.c.b16 %v590, %v588
    %v697 = vpack.c.b16 %v591, %v589
    %v698 = vpack.c.b16 %v594, %v592
    %v699 = vpack.c.b16 %v595, %v593
    %v700 = vpack.c.b16 %v598, %v596
    %v701 = vpack.c.b16 %v599, %v597
    %v702 = vpack.c.b16 %v602, %v600
    %v703 = vpack.c.b16 %v603, %v601
    %v704 = vpack.c.b16 %v606, %v604
    %v705 = vpack.c.b16 %v607, %v605
    %v706 = vpack.c.b16 %v610, %v608
    %v707 = vpack.c.b16 %v611, %v609
    %v708 = vpack.c.b16 %v614, %v612
    %v709 = vpack.c.b16 %v615, %v613
    %v710 = vpack.c.b16 %v618, %v616
    %v711 = vpack.c.b16 %v619, %v617
    %v712 = vpack.c.b16 %v622, %v620
    %v713 = vpack.c.b16 %v623, %v621
    %v714 = vpack.c.b16 %v626, %v624
    %v715 = vpack.c.b16 %v627, %v625
    %v716 = vpack.c.b16 %v630, %v628
    %v717 = vpack.c.b16 %v631, %v629
    %v718 = vpack.c.b16 %v634, %v632
    %v719 = vpack.c.b16 %v635, %v633
    %v720 = vpack.c.b16 %v638, %v636
    %v721 = vpack.c.b16 %v639, %v637
    %v722 = vpack.c.b16 %v642, %v640
    %v723 = vpack.c.b16 %v643, %v641
    %v724 = vpack.c.b16 %v646, %v644
    %v725 = vpack.c.b16 %v647, %v645
    %v726 = vpack.c.b16 %v650, %v648
    %v727 = vpack.c.b16 %v651, %v649
    %v728 = vpack.c.b16 %v654, %v652
    %v729 = vpack.c.b16 %v655, %v653
    %v730 = vpack.c.b16 %v658, %v656
    %v731 = vpack.c.b16 %v659, %v657
    %v732 = vpack.c.b16 %v662, %v660
    %v733 = vpack.c.b16 %v663, %v661
    %v734 = vpack.c.b16 %v666, %v664
    %v735 = vpack.c.b16 %v667, %v665
    %v736 = vpack.c.b16 %v670, %v668
    %v737 = vpack.c.b16 %v671, %v669
    %v738 = vpack.c.b16 %v674, %v672
    %v739 = vpack.c.b16 %v675, %v673
    %804 = vmatprep.subr.bf16.mxu0 %v677
    %805 = vmatpush1.bf16.msra.mxu0 %v676
    %806 = vmatprep.subr.bf16.mxu0 %v679
    %807 = vmatpush1.bf16.msra.mxu0 %v678
    %808 = vmatprep.subr.bf16.mxu0 %v681
    %809 = vmatpush1.bf16.msra.mxu0 %v680
    %810 = vmatprep.subr.bf16.mxu0 %v683
    %811 = vmatpush1.bf16.msra.mxu0 %v682
    %812 = vmatprep.subr.bf16.mxu0 %v685
    %813 = vmatpush1.bf16.msra.mxu0 %v684
    %814 = vmatprep.subr.bf16.mxu0 %v687
    %815 = vmatpush1.bf16.msra.mxu0 %v686
    %816 = vmatprep.subr.bf16.mxu0 %v689
    %817 = vmatpush1.bf16.msra.mxu0 %v688
    %818 = vmatprep.subr.bf16.mxu0 %v691
    %819 = vmatpush1.bf16.msra.mxu0 %v690
    %820 = vmatprep.subr.bf16.mxu0 %v693
    %821 = vmatpush1.bf16.msra.mxu0 %v692
    %822 = vmatprep.subr.bf16.mxu0 %v695
    %823 = vmatpush1.bf16.msra.mxu0 %v694
    %824 = vmatprep.subr.bf16.mxu0 %v697
    %825 = vmatpush1.bf16.msra.mxu0 %v696
    %826 = vmatprep.subr.bf16.mxu0 %v699
    %827 = vmatpush1.bf16.msra.mxu0 %v698
    %828 = vmatprep.subr.bf16.mxu0 %v701
    %829 = vmatpush1.bf16.msra.mxu0 %v700
    %830 = vmatprep.subr.bf16.mxu0 %v703
    %831 = vmatpush1.bf16.msra.mxu0 %v702
    %832 = vmatprep.subr.bf16.mxu0 %v705
    %833 = vmatpush1.bf16.msra.mxu0 %v704
    %834 = vmatprep.subr.bf16.mxu0 %v707
    %835 = vmatpush1.bf16.msra.mxu0 %v706
    %836 = vmatprep.mubr.bf16.mxu0 %v405
    %837 = vmatmul.mubr.bf16.gmra.mrb[0].mxu0 %v404
    %v838 = vpop.f32.mrb[0].mxu0
    %v839 = vadd.f32 %v477, %v838
    %v840 = vpop.f32.mrb[0].mxu0
    %v841 = vadd.f32 %v481, %v840
    %v842 = vpop.f32.mrb[0].mxu0
    %v843 = vadd.f32 %v477, %v842
    %v844 = vpop.f32.mrb[0].mxu0
    %v845 = vadd.f32 %v481, %v844
    %846 = vdwg.mxu0
    %847 = vmatprep.subr.bf16.mxu0 %v709
    %848 = vmatpush1.bf16.msra.mxu0 %v708
    %849 = vmatprep.subr.bf16.mxu0 %v711
    %850 = vmatpush1.bf16.msra.mxu0 %v710
    %851 = vmatprep.subr.bf16.mxu0 %v713
    %852 = vmatpush1.bf16.msra.mxu0 %v712
    %853 = vmatprep.subr.bf16.mxu0 %v715
    %854 = vmatpush1.bf16.msra.mxu0 %v714
    %855 = vmatprep.subr.bf16.mxu0 %v717
    %856 = vmatpush1.bf16.msra.mxu0 %v716
    %857 = vmatprep.subr.bf16.mxu0 %v719
    %858 = vmatpush1.bf16.msra.mxu0 %v718
    %859 = vmatprep.subr.bf16.mxu0 %v721
    %860 = vmatpush1.bf16.msra.mxu0 %v720
    %861 = vmatprep.subr.bf16.mxu0 %v723
    %862 = vmatpush1.bf16.msra.mxu0 %v722
    %863 = vmatprep.subr.bf16.mxu0 %v725
    %864 = vmatpush1.bf16.msra.mxu0 %v724
    %865 = vmatprep.subr.bf16.mxu0 %v727
    %866 = vmatpush1.bf16.msra.mxu0 %v726
    %867 = vmatprep.subr.bf16.mxu0 %v729
    %868 = vmatpush1.bf16.msra.mxu0 %v728
    %869 = vmatprep.subr.bf16.mxu0 %v731
    %870 = vmatpush1.bf16.msra.mxu0 %v730
    %871 = vmatprep.subr.bf16.mxu0 %v733
    %872 = vmatpush1.bf16.msra.mxu0 %v732
    %873 = vmatprep.subr.bf16.mxu0 %v735
    %874 = vmatpush1.bf16.msra.mxu0 %v734
    %875 = vmatprep.subr.bf16.mxu0 %v737
    %876 = vmatpush1.bf16.msra.mxu0 %v736
    %877 = vmatprep.subr.bf16.mxu0 %v739
    %878 = vmatpush1.bf16.msra.mxu0 %v738
    %879 = vmatprep.mubr.bf16.mxu0 %v407
    %880 = vmatmul.mubr.bf16.gmra.mrb[0].mxu0 %v406
    %v881 = vpop.f32.mrb[0].mxu0
    %v882 = vadd.f32 %v839, %v881
    %v883 = vpop.f32.mrb[0].mxu0
    %v884 = vadd.f32 %v841, %v883
    %v885 = vpop.f32.mrb[0].mxu0
    %v886 = vadd.f32 %v843, %v885
    %v887 = vpop.f32.mrb[0].mxu0
    %v888 = vadd.f32 %v845, %v887
    %889 = vdwg.mxu0
    %v890 = vpack.c.bf16 %v886, %v882
    %v891 = vpack.c.bf16 %v888, %v884
    %v892 = vmax.bf16 %v890, 0
    %v893 = vmax.bf16 %v891, 0
    %v894 = vld [vmem:[#allocation7] sm:$0xf]
    %v895 = vld [vmem:[#allocation7 + $0x4] sm:$0xf]
    %v896 = vld [vmem:[#allocation7 + $0x8] sm:$0xf]
    %v897 = vld [vmem:[#allocation7 + $0xc] sm:$0xf]
    %v898 = vld [vmem:[#allocation7 + $0x10] sm:$0xf]
    %v899 = vld [vmem:[#allocation7 + $0x14] sm:$0xf]
    %v900 = vld [vmem:[#allocation7 + $0x18] sm:$0xf]
    %v901 = vld [vmem:[#allocation7 + $0x1c] sm:$0xf]
    %v902 = vld [vmem:[#allocation7 + $0x20] sm:$0xf]
    %v903 = vld [vmem:[#allocation7 + $0x24] sm:$0xf]
    %v904 = vld [vmem:[#allocation7 + $0x28] sm:$0xf]
    %v905 = vld [vmem:[#allocation7 + $0x2c] sm:$0xf]
    %v906 = vld [vmem:[#allocation7 + $0x30] sm:$0xf]
    %v907 = vld [vmem:[#allocation7 + $0x34] sm:$0xf]
    %v908 = vld [vmem:[#allocation7 + $0x38] sm:$0xf]
    %v909 = vld [vmem:[#allocation7 + $0x3c] sm:$0xf]
    %v910 = vld [vmem:[#allocation7 + $0x40] sm:$0xf]
    %v911 = vld [vmem:[#allocation7 + $0x44] sm:$0xf]
    %v912 = vld [vmem:[#allocation7 + $0x48] sm:$0xf]
    %v913 = vld [vmem:[#allocation7 + $0x4c] sm:$0xf]
    %v914 = vld [vmem:[#allocation7 + $0x50] sm:$0xf]
    %v915 = vld [vmem:[#allocation7 + $0x54] sm:$0xf]
    %v916 = vld [vmem:[#allocation7 + $0x58] sm:$0xf]
    %v917 = vld [vmem:[#allocation7 + $0x5c] sm:$0xf]
    %v918 = vld [vmem:[#allocation7 + $0x60] sm:$0xf]
    %v919 = vld [vmem:[#allocation7 + $0x64] sm:$0xf]
    %v920 = vld [vmem:[#allocation7 + $0x68] sm:$0xf]
    %v921 = vld [vmem:[#allocation7 + $0x6c] sm:$0xf]
    %v922 = vld [vmem:[#allocation7 + $0x70] sm:$0xf]
    %v923 = vld [vmem:[#allocation7 + $0x74] sm:$0xf]
    %v924 = vld [vmem:[#allocation7 + $0x78] sm:$0xf]
    %v925 = vld [vmem:[#allocation7 + $0x7c] sm:$0xf]
    %v926 = vld [vmem:[%s6] sm:$0x1]
    %v928 = vlaneseq
    %v929 = vshrl.u32 %v928, 7
    %v930 = vsub.s32 0, %v929
    %v931 = vrot.slane %v926, %v930
    %v965 = vunpack.c.l.b16 %v894
    %v966 = vunpack.c.l.b16 %v895
    %v967 = vunpack.c.l.b16 %v896
    %v968 = vunpack.c.l.b16 %v897
    %v969 = vunpack.c.l.b16 %v898
    %v970 = vunpack.c.l.b16 %v899
    %v971 = vunpack.c.l.b16 %v900
    %v972 = vunpack.c.l.b16 %v901
    %v973 = vunpack.c.l.b16 %v902
    %v974 = vunpack.c.l.b16 %v903
    %v975 = vunpack.c.l.b16 %v904
    %v976 = vunpack.c.l.b16 %v905
    %v977 = vunpack.c.l.b16 %v906
    %v978 = vunpack.c.l.b16 %v907
    %v979 = vunpack.c.l.b16 %v908
    %v980 = vunpack.c.l.b16 %v909
    %v981 = vunpack.c.l.b16 %v910
    %v982 = vunpack.c.l.b16 %v911
    %v983 = vunpack.c.l.b16 %v912
    %v984 = vunpack.c.l.b16 %v913
    %v985 = vunpack.c.l.b16 %v914
    %v986 = vunpack.c.l.b16 %v915
    %v987 = vunpack.c.l.b16 %v916
    %v988 = vunpack.c.l.b16 %v917
    %v989 = vunpack.c.l.b16 %v918
    %v990 = vunpack.c.l.b16 %v919
    %v991 = vunpack.c.l.b16 %v920
    %v992 = vunpack.c.l.b16 %v921
    %v993 = vunpack.c.l.b16 %v922
    %v994 = vunpack.c.l.b16 %v923
    %v995 = vunpack.c.l.b16 %v924
    %v996 = vunpack.c.l.b16 %v925
    %v997 = vpack.c.b16 %v966, %v965
    %v998 = vpack.c.b16 %v968, %v967
    %v999 = vpack.c.b16 %v970, %v969
    %v1000 = vpack.c.b16 %v972, %v971
    %v1001 = vpack.c.b16 %v974, %v973
    %v1002 = vpack.c.b16 %v976, %v975
    %v1003 = vpack.c.b16 %v978, %v977
    %v1004 = vpack.c.b16 %v980, %v979
    %v1005 = vpack.c.b16 %v982, %v981
    %v1006 = vpack.c.b16 %v984, %v983
    %v1007 = vpack.c.b16 %v986, %v985
    %v1008 = vpack.c.b16 %v988, %v987
    %v1009 = vpack.c.b16 %v990, %v989
    %v1010 = vpack.c.b16 %v992, %v991
    %v1011 = vpack.c.b16 %v994, %v993
    %v1012 = vpack.c.b16 %v996, %v995
    %1029 = vmatprep.subr.bf16.mxu0 0
    %1030 = vmatpush1.bf16.msra.mxu0 %v997
    %1031 = vmatprep.subr.bf16.mxu0 0
    %1032 = vmatpush1.bf16.msra.mxu0 %v998
    %1033 = vmatprep.subr.bf16.mxu0 0
    %1034 = vmatpush1.bf16.msra.mxu0 %v999
    %1035 = vmatprep.subr.bf16.mxu0 0
    %1036 = vmatpush1.bf16.msra.mxu0 %v1000
    %1037 = vmatprep.subr.bf16.mxu0 0
    %1038 = vmatpush1.bf16.msra.mxu0 %v1001
    %1039 = vmatprep.subr.bf16.mxu0 0
    %1040 = vmatpush1.bf16.msra.mxu0 %v1002
    %1041 = vmatprep.subr.bf16.mxu0 0
    %1042 = vmatpush1.bf16.msra.mxu0 %v1003
    %1043 = vmatprep.subr.bf16.mxu0 0
    %1044 = vmatpush1.bf16.msra.mxu0 %v1004
    %1045 = vmatprep.subr.bf16.mxu0 0
    %1046 = vmatpush1.bf16.msra.mxu0 %v1005
    %1047 = vmatprep.subr.bf16.mxu0 0
    %1048 = vmatpush1.bf16.msra.mxu0 %v1006
    %1049 = vmatprep.subr.bf16.mxu0 0
    %1050 = vmatpush1.bf16.msra.mxu0 %v1007
    %1051 = vmatprep.subr.bf16.mxu0 0
    %1052 = vmatpush1.bf16.msra.mxu0 %v1008
    %1053 = vmatprep.subr.bf16.mxu0 0
    %1054 = vmatpush1.bf16.msra.mxu0 %v1009
    %1055 = vmatprep.subr.bf16.mxu0 0
    %1056 = vmatpush1.bf16.msra.mxu0 %v1010
    %1057 = vmatprep.subr.bf16.mxu0 0
    %1058 = vmatpush1.bf16.msra.mxu0 %v1011
    %1059 = vmatprep.subr.bf16.mxu0 0
    %1060 = vmatpush1.bf16.msra.mxu0 %v1012
    %1061 = vmatprep.mubr.bf16.mxu0 %v893
    %1062 = vmatmul.mubr.bf16.gmra.mrb[0].mxu0 %v892
    %v1063 = vpop.f32.mrb[0].mxu0
    %v1064 = vadd.f32 %v931, %v1063
    %v1065 = vpop.f32.mrb[0].mxu0
    %v1066 = vpop.f32.mrb[0].mxu0
    %v1067 = vadd.f32 %v931, %v1066
    %v1068 = vpop.f32.mrb[0].mxu0
    %1069 = vdwg.mxu0
    %v1070 = vpack.c.bf16 %v1067, %v1064
    %v1071 = vmax.bf16 %v1070, 0
    %v1072 = vld [vmem:[#allocation8] sm:$0xf]
    %v1073 = vld [vmem:[#allocation8 + $0x4] sm:$0xf]
    %v1074 = vld [vmem:[#allocation8 + $0x8] sm:$0xf]
    %v1075 = vld [vmem:[#allocation8 + $0xc] sm:$0xf]
    %v1076 = vld [vmem:[#allocation8 + $0x10] sm:$0xf]
    %v1077 = vld [vmem:[#allocation8 + $0x14] sm:$0xf]
    %v1078 = vld [vmem:[#allocation8 + $0x18] sm:$0xf]
    %v1079 = vld [vmem:[#allocation8 + $0x1c] sm:$0xf]
    %v1080 = vld [vmem:[#allocation8 + $0x20] sm:$0xf]
    %v1081 = vld [vmem:[#allocation8 + $0x24] sm:$0xf]
    %v1082 = vld [vmem:[#allocation8 + $0x28] sm:$0xf]
    %v1083 = vld [vmem:[#allocation8 + $0x2c] sm:$0xf]
    %v1084 = vld [vmem:[#allocation8 + $0x30] sm:$0xf]
    %v1085 = vld [vmem:[#allocation8 + $0x34] sm:$0xf]
    %v1086 = vld [vmem:[#allocation8 + $0x38] sm:$0xf]
    %v1087 = vld [vmem:[#allocation8 + $0x3c] sm:$0xf]
    %v1088 = vld [vmem:[%s8] sm:$0x1]
    %v1090 = vlaneseq
    %v1091 = vshrl.u32 %v1090, 7
    %v1092 = vsub.s32 0, %v1091
    %v1093 = vrot.slane %v1088, %v1092
    %v1111 = vunpack.c.l.b16 %v1072
    %v1112 = vunpack.c.l.b16 %v1073
    %v1113 = vunpack.c.l.b16 %v1074
    %v1114 = vunpack.c.l.b16 %v1075
    %v1115 = vunpack.c.l.b16 %v1076
    %v1116 = vunpack.c.l.b16 %v1077
    %v1117 = vunpack.c.l.b16 %v1078
    %v1118 = vunpack.c.l.b16 %v1079
    %v1119 = vunpack.c.l.b16 %v1080
    %v1120 = vunpack.c.l.b16 %v1081
    %v1121 = vunpack.c.l.b16 %v1082
    %v1122 = vunpack.c.l.b16 %v1083
    %v1123 = vunpack.c.l.b16 %v1084
    %v1124 = vunpack.c.l.b16 %v1085
    %v1125 = vunpack.c.l.b16 %v1086
    %v1126 = vunpack.c.l.b16 %v1087
    %v1127 = vpack.c.b16 %v1112, %v1111
    %v1128 = vpack.c.b16 %v1114, %v1113
    %v1129 = vpack.c.b16 %v1116, %v1115
    %v1130 = vpack.c.b16 %v1118, %v1117
    %v1131 = vpack.c.b16 %v1120, %v1119
    %v1132 = vpack.c.b16 %v1122, %v1121
    %v1133 = vpack.c.b16 %v1124, %v1123
    %v1134 = vpack.c.b16 %v1126, %v1125
    %1143 = vmatprep.subr.bf16.mxu0 0
    %1144 = vmatpush1.bf16.msra.mxu0 %v1127
    %1145 = vmatprep.subr.bf16.mxu0 0
    %1146 = vmatpush1.bf16.msra.mxu0 %v1128
    %1147 = vmatprep.subr.bf16.mxu0 0
    %1148 = vmatpush1.bf16.msra.mxu0 %v1129
    %1149 = vmatprep.subr.bf16.mxu0 0
    %1150 = vmatpush1.bf16.msra.mxu0 %v1130
    %1151 = vmatprep.subr.bf16.mxu0 0
    %1152 = vmatpush1.bf16.msra.mxu0 %v1131
    %1153 = vmatprep.subr.bf16.mxu0 0
    %1154 = vmatpush1.bf16.msra.mxu0 %v1132
    %1155 = vmatprep.subr.bf16.mxu0 0
    %1156 = vmatpush1.bf16.msra.mxu0 %v1133
    %1157 = vmatprep.subr.bf16.mxu0 0
    %1158 = vmatpush1.bf16.msra.mxu0 %v1134
    %1159 = vmatprep.subr.bf16.mxu0 0
    %1160 = vmatpush1.bf16.msra.mxu0 0
    %1161 = vmatprep.subr.bf16.mxu0 0
    %1162 = vmatpush1.bf16.msra.mxu0 0
    %1163 = vmatprep.subr.bf16.mxu0 0
    %1164 = vmatpush1.bf16.msra.mxu0 0
    %1165 = vmatprep.subr.bf16.mxu0 0
    %1166 = vmatpush1.bf16.msra.mxu0 0
    %1167 = vmatprep.subr.bf16.mxu0 0
    %1168 = vmatpush1.bf16.msra.mxu0 0
    %1169 = vmatprep.subr.bf16.mxu0 0
    %1170 = vmatpush1.bf16.msra.mxu0 0
    %1171 = vmatprep.subr.bf16.mxu0 0
    %1172 = vmatpush1.bf16.msra.mxu0 0
    %1173 = vmatprep.subr.bf16.mxu0 0
    %1174 = vmatpush1.bf16.msra.mxu0 0
    %1175 = vmatprep.mubr.bf16.mxu0 0
    %1176 = vmatmul.mubr.bf16.gmra.mrb[0].mxu0 %v1071
    %v1177 = vpop.f32.mrb[0].mxu0
    %v1178 = vadd.f32 %v1093, %v1177
    %v1179 = vpop.f32.mrb[0].mxu0
    %v1180 = vpop.f32.mrb[0].mxu0
    %v1181 = vadd.f32 %v1093, %v1180
    %v1182 = vpop.f32.mrb[0].mxu0
    %1183 = vdwg.mxu0
    %1184 = vst [vmem:[%s9] sm:$0xff] %v1178
    %1185 = vst [vmem:[%s9 + $0x8] sm:$0xff] %v1181
    // Predicated region
    $region54: #{state_based_q_network.1} parent=1 // pred_check
      _
    $region55: #{state_based_q_network.1} parent=1 // pred_check_branch
      %1187 = sbr.rel (0) target = $region57
    $region56: #{state_based_q_network.1} parent=1 // pred_region
      _
    $region57: #{state_based_q_network.1} parent=1 // pred_fallthru
      _
    // Predicated region
    $region58: #{state_based_q_network.1} parent=1 // pred_check
      _
    $region59: #{state_based_q_network.1} parent=1 // pred_check_branch
      %1189 = sbr.rel (0) target = $region61
    $region60: #{state_based_q_network.1} parent=1 // pred_region
      _
    $region61: #{state_based_q_network.1} parent=1 // pred_fallthru
      _
    %1190 = vsyncpa [#allocation4], 1
    %1191 = vsyncpa [#allocation6], 1
    %1192 = vsyncpa [#allocation9], 1

</llo_original>
